<compile_context>
chip_gen: v5e
topology: v5e:2x2
jax: 0.10.0
libtpu: 0.0.40
codegen_flags: <defaults>
</compile_context>

<pallas_src>
import numpy as np
import jax
import jax.numpy as jnp
from jax import lax
from jax.experimental import pallas as pl
from jax.experimental.pallas import tpu as pltpu


# ---------------------------------------------------------------------------
# Pallas kernel: fused (conv-as-matmul) -> ReLU -> FC -> ReLU -> FC
# All biases are already folded into the (bf16) weight matrices.
# ---------------------------------------------------------------------------
def dqn_kernel(x_ref, w1_ref, w2_ref, w3_ref, o_ref):
    # x_ref : (TILE_B, 16) bf16   (cols 0..8 = board, col 9 = 1.0, rest 0)
    # w1_ref: (16, 128)   bf16    (conv-as-matmul + bias row + constant channel)
    # w2_ref: (128, 128)  bf16    (fc1 + bias row + constant channel)
    # w3_ref: (128, 16)   bf16    (fc2 + bias row; only cols 0..8 are real)
    h1 = jnp.dot(x_ref[...], w1_ref[...], preferred_element_type=jnp.float32)
    h1 = jnp.maximum(h1, 0.0).astype(jnp.bfloat16)          # (TILE_B, 128)
    h2 = jnp.dot(h1, w2_ref[...], preferred_element_type=jnp.float32)
    h2 = jnp.maximum(h2, 0.0).astype(jnp.bfloat16)          # (TILE_B, 128)
    # fc2 (no activation); narrow f32 store, real Q-values in cols 0..8
    o_ref[...] = jnp.dot(h2, w3_ref[...], preferred_element_type=jnp.float32)


def _round_up(a, m):
    return ((a + m - 1) // m) * m


def dqn_forward(x, w1, w2, w3, *, tile_b_max=2048):
    """x: (B, 1, 3, 3) or (B, 9) float32.  Returns (B, 9) f32 Q-values."""
    x = jnp.asarray(x, jnp.float32).reshape(-1, 9)
    B = x.shape[0]

    # Amortize per-grid-step overhead with large tiles, but keep >= 2 grid
    # steps (when B allows) so the "parallel" axis can use both v7x cores.
    tile_b = int(min(tile_b_max, max(8, _round_up(pl.cdiv(B, 2), 8))))
    nb = pl.cdiv(B, tile_b)
    Bp = nb * tile_b

    # Augmented input: cols 0..8 = board (bf16), col 9 = constant 1 (bias
    # channel), cols 10..15 = 0.  Built with one concat + one row-pad; padded
    # rows are all-zero and are sliced off below.
    x_bf = x.astype(jnp.bfloat16)
    x_aug = jnp.concatenate(
        [x_bf, jnp.ones((B, 1), jnp.bfloat16), jnp.zeros((B, 6), jnp.bfloat16)],
        axis=1)                                            # (B, 16)
    x_aug = jnp.pad(x_aug, ((0, Bp - B), (0, 0)))          # (Bp, 16)

    out = pl.pallas_call(
        dqn_kernel,
        out_shape=jax.ShapeDtypeStruct((Bp, 16), jnp.float32),
        grid=(nb,),
        in_specs=[
            pl.BlockSpec((tile_b, 16), lambda i: (i, 0)),   # x tile per step
            pl.BlockSpec((16, 128), lambda i: (0, 0)),      # weights resident
            pl.BlockSpec((128, 128), lambda i: (0, 0)),
            pl.BlockSpec((128, 16), lambda i: (0, 0)),
        ],
        out_specs=pl.BlockSpec((tile_b, 16), lambda i: (i, 0)),
        compiler_params=pltpu.CompilerParams(
            dimension_semantics=("parallel",)),             # megacore on v7x
    )(x_aug, w1, w2, w3)

    return out[:B, :9]


# ---------------------------------------------------------------------------
# Parameter prep: fold conv + all biases into three bf16 matrices
# ---------------------------------------------------------------------------
def build_fused_params(conv_w, conv_b, fc1_w, fc1_b, fc2_w, fc2_b):
    cw = np.asarray(conv_w, np.float32)   # (16, 1, 2, 2)
    cb = np.asarray(conv_b, np.float32)   # (16,)

    # Layer 1: (16, 128). Rows 0..8 = flattened 3x3 input, row 9 = ones column
    # (carries the conv bias and seeds the constant channel at column 64).
    W1 = np.zeros((16, 128), np.float32)
    for c in range(16):
        for oh in range(2):
            for ow in range(2):
                j = c * 4 + oh * 2 + ow            # PyTorch channel-major flatten
                W1[9, j] = cb[c]
                for kh in range(2):
                    for kw in range(2):
                        W1[(oh + kh) * 3 + (ow + kw), j] = cw[c, 0, kh, kw]
    W1[9, 64] = 1.0                                 # constant-1 channel

    # Layer 2: (128, 128). Rows 0..63 = fc1 weights, row 64 = fc1 bias,
    # column 64 re-emits the constant 1 (ReLU(1)=1, exact in bf16).
    W2 = np.zeros((128, 128), np.float32)
    W2[:64, :64] = np.asarray(fc1_w, np.float32).T  # (64, 64)
    W2[64, :64] = np.asarray(fc1_b, np.float32)
    W2[64, 64] = 1.0

    # Layer 3: (128, 16). Rows 0..63 = fc2 weights, row 64 = fc2 bias.
    # Only output columns 0..8 are real; cols 9..15 are zero lane padding.
    W3 = np.zeros((128, 16), np.float32)
    W3[:64, :9] = np.asarray(fc2_w, np.float32).T   # (64, 9)
    W3[64, :9] = np.asarray(fc2_b, np.float32)

    return (jnp.asarray(W1, jnp.bfloat16),
            jnp.asarray(W2, jnp.bfloat16),
            jnp.asarray(W3, jnp.bfloat16))


# ---------------------------------------------------------------------------
# References
# ---------------------------------------------------------------------------
def reference_forward(x, conv_w, conv_b, fc1_w, fc1_b, fc2_w, fc2_b,
                      *, mimic_bf16):
    """Pure-JAX reference matching the PyTorch forward (NCHW).

    With mimic_bf16=True, weights/inputs/intermediate activations are rounded
    to bf16 exactly like the kernel does, giving a tight comparison target.
    """
    q = (lambda a: a.astype(jnp.bfloat16).astype(jnp.float32)) if mimic_bf16 \
        else (lambda a: a)
    B = x.shape[0]
    xi = q(x).reshape(B, 1, 3, 3)
    out = lax.conv_general_dilated(
        xi, q(conv_w), window_strides=(1, 1), padding="VALID",
        dimension_numbers=("NCHW", "OIHW", "NCHW"))
    out = out + q(conv_b).reshape(1, 16, 1, 1)
    h = jnp.maximum(out, 0.0).reshape(B, -1)        # (B, 64) channel-major
    h = q(h)
    h = jnp.maximum(h @ q(fc1_w).T + q(fc1_b), 0.0)
    h = q(h)
    return h @ q(fc2_w).T + q(fc2_b)


def _uniform(key, shape, fan_in):
    bound = 1.0 / np.sqrt(fan_in)
    return jax.random.uniform(key, shape, jnp.float32, -bound, bound)


if __name__ == "__main__":
    key = jax.random.PRNGKey(0)
    k_cw, k_cb, k_1w, k_1b, k_2w, k_2b, k_x = jax.random.split(key, 7)

    # PyTorch parameter shapes from __init__ (PyTorch-style uniform init)
    conv_w = _uniform(k_cw, (16, 1, 2, 2), fan_in=1 * 2 * 2)   # Conv2d(1, 16, 2)
    conv_b = _uniform(k_cb, (16,), fan_in=1 * 2 * 2)
    fc1_w = _uniform(k_1w, (64, 64), fan_in=64)                # Linear(64, 64)
    fc1_b = _uniform(k_1b, (64,), fan_in=64)
    fc2_w = _uniform(k_2w, (9, 64), fan_in=64)                 # Linear(64, 9)
    fc2_b = _uniform(k_2b, (9,), fan_in=64)

    # Fused, bias-folded, lane-padded bf16 kernel parameters
    w1, w2, w3 = build_fused_params(conv_w, conv_b, fc1_w, fc1_b, fc2_w, fc2_b)

    # Example input: a batch of boards (B not a multiple of the tile, to
    # exercise the padding path and give 2 grid steps). Shape (B, 1, 3, 3) NCHW.
    B = 300
    x_nchw = jax.random.normal(k_x, (B, 1, 3, 3), jnp.float32)

    out = dqn_forward(x_nchw, w1, w2, w3)
    out = jax.block_until_ready(out)
    assert out.shape == (B, 9)

    # Tight check against a reference that mirrors the kernel's bf16 rounding.
    ref_bf16 = reference_forward(x_nchw.reshape(B, 9), conv_w, conv_b,
                                 fc1_w, fc1_b, fc2_w, fc2_b, mimic_bf16=True)
    np.testing.assert_allclose(np.asarray(out), np.asarray(ref_bf16),
                               rtol=1e-3, atol=1e-3)

    # Loose sanity check against the exact-f32 PyTorch-equivalent forward.
    ref_f32 = reference_forward(x_nchw.reshape(B, 9), conv_w, conv_b,
                                fc1_w, fc1_b, fc2_w, fc2_b, mimic_bf16=False)
    np.testing.assert_allclose(np.asarray(out), np.asarray(ref_f32),
                               rtol=5e-2, atol=5e-2)

    print("KERNEL_OK")
</pallas_src>

<mosaic_0001>
module attributes {stable_mosaic.version = 11 : i64} {
  func.func @dqn_kernel(%arg0: i32, %arg1: memref<152x16xbf16, #tpu.memory_space<vmem>>, %arg2: memref<16x128xbf16, #tpu.memory_space<vmem>>, %arg3: memref<128x128xbf16, #tpu.memory_space<vmem>>, %arg4: memref<128x16xbf16, #tpu.memory_space<vmem>>, %arg5: memref<152x16xf32, #tpu.memory_space<vmem>>) attributes {dimension_semantics = [#tpu.dimension_semantics<parallel>], iteration_bounds = array<i64: 2>, scalar_prefetch = 0 : i64, scratch_operands = 0 : i64, tpu.core_type = #tpu.core_type<tc>, window_params = [{transform_indices = @transform_0, window_bounds = array<i64: 152, 16>}, {pipeline_mode = #tpu.pipeline_mode<synchronous>, transform_indices = @transform_1, window_bounds = array<i64: 16, 128>}, {pipeline_mode = #tpu.pipeline_mode<synchronous>, transform_indices = @transform_2, window_bounds = array<i64: 128, 128>}, {pipeline_mode = #tpu.pipeline_mode<synchronous>, transform_indices = @transform_3, window_bounds = array<i64: 128, 16>}, {transform_indices = @transform_4, window_bounds = array<i64: 152, 16>}]} {
    %c0 = arith.constant 0 : index
    %c0_0 = arith.constant 0 : index
    %0 = vector.load %arg1[%c0, %c0_0] : memref<152x16xbf16, #tpu.memory_space<vmem>>, vector<152x16xbf16>
    %c0_1 = arith.constant 0 : index
    %c0_2 = arith.constant 0 : index
    %1 = vector.load %arg2[%c0_1, %c0_2] : memref<16x128xbf16, #tpu.memory_space<vmem>>, vector<16x128xbf16>
    %cst = arith.constant dense<0.000000e+00> : vector<152x128xf32>
    %2 = tpu.matmul %0, %1, %cst {dimension_numbers = #tpu.dot_dimension_numbers<[1], [0], [0], [1], [0, 0, 1, 1], [], []>} : vector<152x16xbf16>, vector<16x128xbf16>, vector<152x128xf32> -> vector<152x128xf32>
    %cst_3 = arith.constant 0.000000e+00 : f32
    %3 = vector.broadcast %cst_3 : f32 to vector<152x128xf32>
    %4 = arith.maximumf %2, %3 : vector<152x128xf32>
    %5 = arith.truncf %4 : vector<152x128xf32> to vector<152x128xbf16>
    %c0_4 = arith.constant 0 : index
    %c0_5 = arith.constant 0 : index
    %6 = vector.load %arg3[%c0_4, %c0_5] : memref<128x128xbf16, #tpu.memory_space<vmem>>, vector<128x128xbf16>
    %cst_6 = arith.constant dense<0.000000e+00> : vector<152x128xf32>
    %7 = tpu.matmul %5, %6, %cst_6 {dimension_numbers = #tpu.dot_dimension_numbers<[1], [0], [0], [1], [0, 0, 1, 1], [], []>} : vector<152x128xbf16>, vector<128x128xbf16>, vector<152x128xf32> -> vector<152x128xf32>
    %cst_7 = arith.constant 0.000000e+00 : f32
    %8 = vector.broadcast %cst_7 : f32 to vector<152x128xf32>
    %9 = arith.maximumf %7, %8 : vector<152x128xf32>
    %10 = arith.truncf %9 : vector<152x128xf32> to vector<152x128xbf16>
    %c0_8 = arith.constant 0 : index
    %c0_9 = arith.constant 0 : index
    %11 = vector.load %arg4[%c0_8, %c0_9] : memref<128x16xbf16, #tpu.memory_space<vmem>>, vector<128x16xbf16>
    %cst_10 = arith.constant dense<0.000000e+00> : vector<152x16xf32>
    %12 = tpu.matmul %10, %11, %cst_10 {dimension_numbers = #tpu.dot_dimension_numbers<[1], [0], [0], [1], [0, 0, 1, 1], [], []>} : vector<152x128xbf16>, vector<128x16xbf16>, vector<152x16xf32> -> vector<152x16xf32>
    %c0_11 = arith.constant 0 : index
    %c0_12 = arith.constant 0 : index
    %13 = vector.load %arg5[%c0_11, %c0_12] : memref<152x16xf32, #tpu.memory_space<vmem>>, vector<152x16xf32>
    tpu.vector_store %arg5[%c0_11, %c0_12], %12 {strides = array<i32>} : memref<152x16xf32, #tpu.memory_space<vmem>>, vector<152x16xf32>,
    return
  }
  func.func @transform_0(%arg0: i32) -> (i32, i32) {
    %c0_i32 = arith.constant 0 : i32
    %c0_i32_0 = arith.constant 0 : i32
    return %arg0, %c0_i32 : i32, i32
  }
  func.func @transform_1(%arg0: i32) -> (i32, i32) {
    %c0_i32 = arith.constant 0 : i32
    %c0_i32_0 = arith.constant 0 : i32
    %c0_i32_1 = arith.constant 0 : i32
    return %c0_i32, %c0_i32_0 : i32, i32
  }
  func.func @transform_2(%arg0: i32) -> (i32, i32) {
    %c0_i32 = arith.constant 0 : i32
    %c0_i32_0 = arith.constant 0 : i32
    %c0_i32_1 = arith.constant 0 : i32
    return %c0_i32, %c0_i32_0 : i32, i32
  }
  func.func @transform_3(%arg0: i32) -> (i32, i32) {
    %c0_i32 = arith.constant 0 : i32
    %c0_i32_0 = arith.constant 0 : i32
    %c0_i32_1 = arith.constant 0 : i32
    return %c0_i32, %c0_i32_0 : i32, i32
  }
  func.func @transform_4(%arg0: i32) -> (i32, i32) {
    %c0_i32 = arith.constant 0 : i32
    %c0_i32_0 = arith.constant 0 : i32
    return %arg0, %c0_i32 : i32, i32
  }
}

</mosaic_0001>

<llo_original>
// kernel: tpu_custom_call.1
$region0: #{tpu_custom_call.1}
  #allocation0 [shape = 'u32[]', space=smem, size = 0x4, offset = 0x4, fixed_abs, tag = 'smem constant byte address 0x4 - core index']
  #allocation1 [shape = 'u32[72,128]{1,0:T(1,128)}', space=vmem, size = 0x9000, scoped, tag = 'internal scratch']
  %s0 = inlined_call_operand.vmem [shape: bf16[304,16], index: 0, kind: input, shape index: {}]
  %s1 = inlined_call_operand.vmem [shape: bf16[16,128], index: 1, kind: input, shape index: {}]
  %s2 = inlined_call_operand.vmem [shape: bf16[128,128], index: 2, kind: input, shape index: {}]
  %s3 = inlined_call_operand.vmem [shape: bf16[128,16], index: 3, kind: input, shape index: {}]
  %s4 = inlined_call_operand.vmem [shape: f32[304,16], index: 4, kind: output, shape index: {}]
  %s5 = sld [smem:[#allocation0]]
  $region49: #{tpu_custom_call.1} parent=0
    _
  %s7 = ssub.s32 1, %s5
  %s8 = scalar_select 0, %s7, %s5
  loop: start=0, step=1, limit=4
  $region2: #{tpu_custom_call.1} parent=0 // loop_pre_header
    _
  $region3: #{tpu_custom_call.1} parent=0 // loop_header
    %s10 = sphi 0, %s14
    %p11 = scmp.ge.s32.totalorder %s10, 4
    %s20 = sphi 0, %s22
    %s23 = sphi 0, %s20
    %s24 = sphi 0, %s23
    %s40 = sphi 0, %s24
    %s44 = sphi 0, %s44
    %s46 = sphi 0, %s44
    %s47 = sphi 0, %s46
    %s61 = sphi 0, %s47
    %s65 = sphi 0, %s65
    %s67 = sphi 0, %s65
    %s68 = sphi 0, %s67
    %s82 = sphi 0, %s68
    %s86 = sphi 0, %s86
    %s88 = sphi 0, %s86
    %s89 = sphi 0, %s88
    %s103 = sphi 0, %s89
    %s109 = sphi 0, %s111
    %s112 = sphi 0, %s109
    %s113 = sphi 0, %s112
    %s129 = sphi 0, %s113
  $region4: #{tpu_custom_call.1} parent=0 // loop_header_branch
    %13 = sbr.rel (%p11) target = $region8
  $region5: #{tpu_custom_call.1} parent=0 // loop_body
    %s15 = ssub.s32 %s10, 1
    %s16 = ssub.s32 %s10, 2
    %s17 = sadd.s32 %s10, 1
    %s18 = ssub.s32 %s10, %s17
    %p19 = scmp.eq.s32.totalorder %s18, 0
    %s21 = sadd.s32 %s20, 1
    %s22 = scalar_select %p19, %s20, %s21
    %p25 = pneg %p19
    %p26 = scmp.eq.s32.totalorder %s10, 1
    %p27 = por %p25, %p26
    %p28 = scmp.ne.s32.totalorder %s20, %s23
    %p29 = scmp.eq.s32.totalorder %s10, 0
    %p30 = por %p28, %p29
    %p31 = scmp.ne.s32.totalorder %s20, %s23
    %p32 = scmp.eq.s32.totalorder %s15, 1
    %p33 = por %p31, %p32
    %p34 = scmp.ne.s32.totalorder %s23, %s24
    %p35 = scmp.eq.s32.totalorder %s15, 0
    %p36 = por %p34, %p35
    %p37 = scmp.ne.s32.totalorder %s23, %s24
    %p38 = scmp.eq.s32.totalorder %s16, 1
    %p39 = por %p37, %p38
    %p41 = scmp.ne.s32.totalorder %s24, %s40
    %p42 = scmp.eq.s32.totalorder %s16, 0
    %p43 = por %p41, %p42
    %s45 = sadd.s32 %s44, 1
    %p48 = scmp.eq.s32.totalorder %s10, 1
    %p49 = scmp.ne.s32.totalorder %s44, %s46
    %p50 = scmp.eq.s32.totalorder %s10, 0
    %p51 = por %p49, %p50
    %p52 = scmp.ne.s32.totalorder %s44, %s46
    %p53 = scmp.eq.s32.totalorder %s15, 1
    %p54 = por %p52, %p53
    %p55 = scmp.ne.s32.totalorder %s46, %s47
    %p56 = scmp.eq.s32.totalorder %s15, 0
    %p57 = por %p55, %p56
    %p58 = scmp.ne.s32.totalorder %s46, %s47
    %p59 = scmp.eq.s32.totalorder %s16, 1
    %p60 = por %p58, %p59
    %p62 = scmp.ne.s32.totalorder %s47, %s61
    %p63 = scmp.eq.s32.totalorder %s16, 0
    %p64 = por %p62, %p63
    %s66 = sadd.s32 %s65, 1
    %p69 = scmp.eq.s32.totalorder %s10, 1
    %p70 = scmp.ne.s32.totalorder %s65, %s67
    %p71 = scmp.eq.s32.totalorder %s10, 0
    %p72 = por %p70, %p71
    %p73 = scmp.ne.s32.totalorder %s65, %s67
    %p74 = scmp.eq.s32.totalorder %s15, 1
    %p75 = por %p73, %p74
    %p76 = scmp.ne.s32.totalorder %s67, %s68
    %p77 = scmp.eq.s32.totalorder %s15, 0
    %p78 = por %p76, %p77
    %p79 = scmp.ne.s32.totalorder %s67, %s68
    %p80 = scmp.eq.s32.totalorder %s16, 1
    %p81 = por %p79, %p80
    %p83 = scmp.ne.s32.totalorder %s68, %s82
    %p84 = scmp.eq.s32.totalorder %s16, 0
    %p85 = por %p83, %p84
    %s87 = sadd.s32 %s86, 1
    %p90 = scmp.eq.s32.totalorder %s10, 1
    %p91 = scmp.ne.s32.totalorder %s86, %s88
    %p92 = scmp.eq.s32.totalorder %s10, 0
    %p93 = por %p91, %p92
    %p94 = scmp.ne.s32.totalorder %s86, %s88
    %p95 = scmp.eq.s32.totalorder %s15, 1
    %p96 = por %p94, %p95
    %p97 = scmp.ne.s32.totalorder %s88, %s89
    %p98 = scmp.eq.s32.totalorder %s15, 0
    %p99 = por %p97, %p98
    %p100 = scmp.ne.s32.totalorder %s88, %s89
    %p101 = scmp.eq.s32.totalorder %s16, 1
    %p102 = por %p100, %p101
    %p104 = scmp.ne.s32.totalorder %s89, %s103
    %p105 = scmp.eq.s32.totalorder %s16, 0
    %p106 = por %p104, %p105
    %s107 = ssub.s32 %s10, %s17
    %p108 = scmp.eq.s32.totalorder %s107, 0
    %s110 = sadd.s32 %s109, 1
    %s111 = scalar_select %p108, %s109, %s110
    %p114 = pneg %p108
    %p115 = scmp.eq.s32.totalorder %s10, 1
    %p116 = por %p114, %p115
    %p117 = scmp.ne.s32.totalorder %s109, %s112
    %p118 = scmp.eq.s32.totalorder %s10, 0
    %p119 = por %p117, %p118
    %p120 = scmp.ne.s32.totalorder %s109, %s112
    %p121 = scmp.eq.s32.totalorder %s15, 1
    %p122 = por %p120, %p121
    %p123 = scmp.ne.s32.totalorder %s112, %s113
    %p124 = scmp.eq.s32.totalorder %s15, 0
    %p125 = por %p123, %p124
    %p126 = scmp.ne.s32.totalorder %s112, %s113
    %p127 = scmp.eq.s32.totalorder %s16, 1
    %p128 = por %p126, %p127
    %p130 = scmp.ne.s32.totalorder %s113, %s129
    %p131 = scmp.eq.s32.totalorder %s16, 0
    %p132 = por %p130, %p131
    %p133 = scmp.le.s32.totalorder 1, %s10
    %p134 = scmp.lt.s32.totalorder %s10, 3
    %p135 = pnand %p133, %p134
    %p136 = pneg %p135
    // Predicated region
    $region9: #{tpu_custom_call.1} parent=5 // pred_check
      _
    $region10: #{tpu_custom_call.1} parent=5 // pred_check_branch
      %138 = sbr.rel (%p135) target = $region12
    $region11: #{tpu_custom_call.1} parent=5 // pred_region
      %s139 = ssub.s32 %s10, 1
      // Predicated region
      $region13: #{tpu_custom_call.1} parent=11 // pred_check
        %p140 = pneg %p57
      $region14: #{tpu_custom_call.1} parent=11 // pred_check_branch
        %142 = sbr.rel (%p140) target = $region16
      $region15: #{tpu_custom_call.1} parent=11 // pred_region
        _
      $region16: #{tpu_custom_call.1} parent=11 // pred_fallthru
        _
      // Predicated region
      $region17: #{tpu_custom_call.1} parent=11 // pred_check
        %p143 = pneg %p78
      $region18: #{tpu_custom_call.1} parent=11 // pred_check_branch
        %145 = sbr.rel (%p143) target = $region20
      $region19: #{tpu_custom_call.1} parent=11 // pred_region
        _
      $region20: #{tpu_custom_call.1} parent=11 // pred_fallthru
        _
      // Predicated region
      $region21: #{tpu_custom_call.1} parent=11 // pred_check
        %p146 = pneg %p99
      $region22: #{tpu_custom_call.1} parent=11 // pred_check_branch
        %148 = sbr.rel (%p146) target = $region24
      $region23: #{tpu_custom_call.1} parent=11 // pred_region
        _
      $region24: #{tpu_custom_call.1} parent=11 // pred_fallthru
        _
    $region12: #{tpu_custom_call.1} parent=5 // pred_fallthru
      _
    %p149 = scmp.lt.s32.totalorder %s10, 2
    // Predicated region
    $region25: #{tpu_custom_call.1} parent=5 // pred_check
      %p150 = pneg %p149
    $region26: #{tpu_custom_call.1} parent=5 // pred_check_branch
      %152 = sbr.rel (%p150) target = $region28
    $region27: #{tpu_custom_call.1} parent=5 // pred_region
      // Predicated region
      $region29: #{tpu_custom_call.1} parent=27 // pred_check
        %p153 = pneg %p30
      $region30: #{tpu_custom_call.1} parent=27 // pred_check_branch
        %155 = sbr.rel (%p153) target = $region32
      $region31: #{tpu_custom_call.1} parent=27 // pred_region
        %s156 = smul.u32 19, %s10
        %p157 = scmp.lt.s32.totalorder %s156, 37
        %s158 = scalar_select %p157, %s156, 37
        %s159 = smul.addr %s158, 4
        %s160 = scalar_lea.vmem %s0, %s159
        %s161 = smul.u32 19, %s10
      $region32: #{tpu_custom_call.1} parent=27 // pred_fallthru
        _
    $region28: #{tpu_custom_call.1} parent=5 // pred_fallthru
      _
    %p162 = scmp.le.s32.totalorder 1, %s10
    %p163 = scmp.lt.s32.totalorder %s10, 3
    %p164 = pnand %p162, %p163
    %p165 = pneg %p164
    // Predicated region
    $region33: #{tpu_custom_call.1} parent=5 // pred_check
      _
    $region34: #{tpu_custom_call.1} parent=5 // pred_check_branch
      %167 = sbr.rel (%p164) target = $region36
    $region35: #{tpu_custom_call.1} parent=5 // pred_region
      %s168 = ssub.s32 %s10, 1
      %s169 = smul.u32 19, %s15
      %p170 = scmp.lt.s32.totalorder %s169, 37
      %s171 = scalar_select %p170, %s169, 37
      %s172 = smul.addr %s171, 4
      %s173 = scalar_lea.vmem %s0, %s172
      %p174 = pneg %p36
      %p175 = pneg %p33
      %p176 = pneg %p57
      %p177 = pneg %p54
      %p178 = pneg %p78
      %p179 = pneg %p75
      %p180 = pneg %p99
      %p181 = pneg %p96
      %p182 = pneg %p125
      %p183 = pneg %p122
      %s184 = smul.u32 19, %s15
      %p185 = scmp.lt.s32.totalorder %s184, 37
      %s186 = scalar_select %p185, %s184, 37
      %s187 = smul.addr %s186, 8
      %s188 = scalar_lea.vmem %s4, %s187
      %s189 = smul.u32 19, %s15
      %p190 = scmp.lt.s32.totalorder %s189, 37
      %s191 = scalar_select %p190, %s189, 37
      %s192 = smul.addr %s191, 4
      %s193 = scalar_lea.vmem %s0, %s192
      %s194 = smul.u32 19, %s15
      %s195 = smul.u32 19, %s15
      %p196 = scmp.lt.s32.totalorder %s195, 37
      %s197 = scalar_select %p196, %s195, 37
      %s198 = smul.addr %s197, 8
      %s199 = scalar_lea.vmem %s4, %s198
      %s200 = smul.u32 19, %s15
      %v202 = vld [vmem:[%s193] sm:$0xf]
      %v203 = vld [vmem:[%s193 + $0x4] sm:$0xf]
      %v204 = vld [vmem:[%s193 + $0x8] sm:$0xf]
      %v205 = vld [vmem:[%s193 + $0xc] sm:$0xf]
      %v206 = vld [vmem:[%s193 + $0x10] sm:$0xf]
      %v207 = vld [vmem:[%s193 + $0x14] sm:$0xf]
      %v208 = vld [vmem:[%s193 + $0x18] sm:$0xf]
      %v209 = vld [vmem:[%s193 + $0x1c] sm:$0xf]
      %v210 = vld [vmem:[%s193 + $0x20] sm:$0xf]
      %v211 = vld [vmem:[%s193 + $0x24] sm:$0xf]
      %v212 = vld [vmem:[%s193 + $0x28] sm:$0xf]
      %v213 = vld [vmem:[%s193 + $0x2c] sm:$0xf]
      %v214 = vld [vmem:[%s193 + $0x30] sm:$0xf]
      %v215 = vld [vmem:[%s193 + $0x34] sm:$0xf]
      %v216 = vld [vmem:[%s193 + $0x38] sm:$0xf]
      %v217 = vld [vmem:[%s193 + $0x3c] sm:$0xf]
      %v218 = vld [vmem:[%s193 + $0x40] sm:$0xf]
      %v219 = vld [vmem:[%s193 + $0x44] sm:$0xf]
      %v220 = vld [vmem:[%s193 + $0x48] sm:$0xf]
      %v221 = vld [vmem:[%s1] sm:$0xf]
      %v222 = vld [vmem:[%s1 + $0x4] sm:$0xf]
      %v242 = vunpack.c.l.b16 %v202
      %v243 = vunpack.c.l.b16 %v203
      %v244 = vunpack.c.l.b16 %v204
      %v245 = vunpack.c.l.b16 %v205
      %v246 = vunpack.c.l.b16 %v206
      %v247 = vunpack.c.l.b16 %v207
      %v248 = vunpack.c.l.b16 %v208
      %v249 = vunpack.c.l.b16 %v209
      %v250 = vunpack.c.l.b16 %v210
      %v251 = vunpack.c.l.b16 %v211
      %v252 = vunpack.c.l.b16 %v212
      %v253 = vunpack.c.l.b16 %v213
      %v254 = vunpack.c.l.b16 %v214
      %v255 = vunpack.c.l.b16 %v215
      %v256 = vunpack.c.l.b16 %v216
      %v257 = vunpack.c.l.b16 %v217
      %v258 = vunpack.c.l.b16 %v218
      %v259 = vunpack.c.l.b16 %v219
      %v260 = vunpack.c.l.b16 %v220
      %v261 = vpack.c.b16 %v243, %v242
      %v262 = vpack.c.b16 %v245, %v244
      %v263 = vpack.c.b16 %v247, %v246
      %v264 = vpack.c.b16 %v249, %v248
      %v265 = vpack.c.b16 %v251, %v250
      %v266 = vpack.c.b16 %v253, %v252
      %v267 = vpack.c.b16 %v255, %v254
      %v268 = vpack.c.b16 %v257, %v256
      %v269 = vpack.c.b16 %v259, %v258
      %v270 = vpack.c.b16 %v260, %v260
      %v273 = vunpack.c.l.b16 %v221
      %v274 = vunpack.c.l.b16 %v222
      %v275 = vpack.c.b16 %v274, %v273
      %vm277 = vcmask 130048
      %v279 = vsel %vm277, %v261, 0
      %v282 = vsel %vm277, %v262, 0
      %v285 = vsel %vm277, %v263, 0
      %v288 = vsel %vm277, %v264, 0
      %v291 = vsel %vm277, %v265, 0
      %v294 = vsel %vm277, %v266, 0
      %v297 = vsel %vm277, %v267, 0
      %v300 = vsel %vm277, %v268, 0
      %v303 = vsel %vm277, %v269, 0
      %v306 = vsel %vm277, %v270, 0
      %308 = vmatpush.bf16.msra.mxu0 0
      %309 = vmatpush.bf16.msra.mxu0 0
      %310 = vmatpush.bf16.msra.mxu0 0
      %311 = vmatpush.bf16.msra.mxu0 0
      %312 = vmatpush.bf16.msra.mxu0 0
      %313 = vmatpush.bf16.msra.mxu0 0
      %314 = vmatpush.bf16.msra.mxu0 0
      %315 = vmatpush.bf16.msra.mxu0 %v275
      %316 = vmatmul.bf16.gmra.mxu0 %v279
      %v317 = vpop.f32.mrf.mxu0
      %v318 = vadd.f32 0.0, %v317
      %v319 = vpop.f32.mrf.mxu0
      %v320 = vadd.f32 0.0, %v319
      %321 = vmatmul.bf16.gmra.mxu0 %v282
      %v322 = vpop.f32.mrf.mxu0
      %v323 = vadd.f32 0.0, %v322
      %v324 = vpop.f32.mrf.mxu0
      %v325 = vadd.f32 0.0, %v324
      %326 = vmatmul.bf16.gmra.mxu0 %v285
      %v327 = vpop.f32.mrf.mxu0
      %v328 = vadd.f32 0.0, %v327
      %v329 = vpop.f32.mrf.mxu0
      %v330 = vadd.f32 0.0, %v329
      %331 = vmatmul.bf16.gmra.mxu0 %v288
      %v332 = vpop.f32.mrf.mxu0
      %v333 = vadd.f32 0.0, %v332
      %v334 = vpop.f32.mrf.mxu0
      %v335 = vadd.f32 0.0, %v334
      %336 = vmatmul.bf16.gmra.mxu0 %v291
      %v337 = vpop.f32.mrf.mxu0
      %v338 = vadd.f32 0.0, %v337
      %v339 = vpop.f32.mrf.mxu0
      %v340 = vadd.f32 0.0, %v339
      %341 = vmatmul.bf16.gmra.mxu0 %v294
      %v342 = vpop.f32.mrf.mxu0
      %v343 = vadd.f32 0.0, %v342
      %v344 = vpop.f32.mrf.mxu0
      %v345 = vadd.f32 0.0, %v344
      %346 = vmatmul.bf16.gmra.mxu0 %v297
      %v347 = vpop.f32.mrf.mxu0
      %v348 = vadd.f32 0.0, %v347
      %v349 = vpop.f32.mrf.mxu0
      %v350 = vadd.f32 0.0, %v349
      %351 = vmatmul.bf16.gmra.mxu0 %v300
      %v352 = vpop.f32.mrf.mxu0
      %v353 = vadd.f32 0.0, %v352
      %v354 = vpop.f32.mrf.mxu0
      %v355 = vadd.f32 0.0, %v354
      %356 = vmatmul.bf16.gmra.mxu0 %v303
      %v357 = vpop.f32.mrf.mxu0
      %v358 = vadd.f32 0.0, %v357
      %v359 = vpop.f32.mrf.mxu0
      %v360 = vadd.f32 0.0, %v359
      %361 = vmatmul.bf16.gmra.mxu0 %v306
      %v362 = vpop.f32.mrf.mxu0
      %v363 = vadd.f32 0.0, %v362
      %v364 = vpop.f32.mrf.mxu0
      %365 = vdwg.mxu0
      %v366 = vmax.f32 %v318, 0.0
      %v367 = vmax.f32 %v320, 0.0
      %v368 = vmax.f32 %v323, 0.0
      %v369 = vmax.f32 %v325, 0.0
      %v370 = vmax.f32 %v328, 0.0
      %v371 = vmax.f32 %v330, 0.0
      %v372 = vmax.f32 %v333, 0.0
      %v373 = vmax.f32 %v335, 0.0
      %v374 = vmax.f32 %v338, 0.0
      %v375 = vmax.f32 %v340, 0.0
      %v376 = vmax.f32 %v343, 0.0
      %v377 = vmax.f32 %v345, 0.0
      %v378 = vmax.f32 %v348, 0.0
      %v379 = vmax.f32 %v350, 0.0
      %v380 = vmax.f32 %v353, 0.0
      %v381 = vmax.f32 %v355, 0.0
      %v382 = vmax.f32 %v358, 0.0
      %v383 = vmax.f32 %v360, 0.0
      %v384 = vmax.f32 %v363, 0.0
      %v385 = vpack.c.bf16 %v367, %v366
      %v386 = vpack.c.bf16 %v369, %v368
      %v387 = vpack.c.bf16 %v371, %v370
      %v388 = vpack.c.bf16 %v373, %v372
      %v389 = vpack.c.bf16 %v375, %v374
      %v390 = vpack.c.bf16 %v377, %v376
      %v391 = vpack.c.bf16 %v379, %v378
      %v392 = vpack.c.bf16 %v381, %v380
      %v393 = vpack.c.bf16 %v383, %v382
      %v394 = vpack.c.bf16 %v384, %v384
      %v395 = vld [vmem:[%s2] sm:$0xf]
      %v396 = vld [vmem:[%s2 + $0x4] sm:$0xf]
      %v397 = vld [vmem:[%s2 + $0x8] sm:$0xf]
      %v398 = vld [vmem:[%s2 + $0xc] sm:$0xf]
      %v399 = vld [vmem:[%s2 + $0x10] sm:$0xf]
      %v400 = vld [vmem:[%s2 + $0x14] sm:$0xf]
      %v401 = vld [vmem:[%s2 + $0x18] sm:$0xf]
      %v402 = vld [vmem:[%s2 + $0x1c] sm:$0xf]
      %v403 = vld [vmem:[%s2 + $0x20] sm:$0xf]
      %v404 = vld [vmem:[%s2 + $0x24] sm:$0xf]
      %v405 = vld [vmem:[%s2 + $0x28] sm:$0xf]
      %v406 = vld [vmem:[%s2 + $0x2c] sm:$0xf]
      %v407 = vld [vmem:[%s2 + $0x30] sm:$0xf]
      %v408 = vld [vmem:[%s2 + $0x34] sm:$0xf]
      %v409 = vld [vmem:[%s2 + $0x38] sm:$0xf]
      %v410 = vld [vmem:[%s2 + $0x3c] sm:$0xf]
      %v427 = vunpack.c.l.b16 %v395
      %v428 = vunpack.c.l.b16 %v396
      %v429 = vunpack.c.l.b16 %v397
      %v430 = vunpack.c.l.b16 %v398
      %v431 = vunpack.c.l.b16 %v399
      %v432 = vunpack.c.l.b16 %v400
      %v433 = vunpack.c.l.b16 %v401
      %v434 = vunpack.c.l.b16 %v402
      %v435 = vunpack.c.l.b16 %v403
      %v436 = vunpack.c.l.b16 %v404
      %v437 = vunpack.c.l.b16 %v405
      %v438 = vunpack.c.l.b16 %v406
      %v439 = vunpack.c.l.b16 %v407
      %v440 = vunpack.c.l.b16 %v408
      %v441 = vunpack.c.l.b16 %v409
      %v442 = vunpack.c.l.b16 %v410
      %v443 = vpack.c.b16 %v428, %v427
      %v444 = vpack.c.b16 %v430, %v429
      %v445 = vpack.c.b16 %v432, %v431
      %v446 = vpack.c.b16 %v434, %v433
      %v447 = vpack.c.b16 %v436, %v435
      %v448 = vpack.c.b16 %v438, %v437
      %v449 = vpack.c.b16 %v440, %v439
      %v450 = vpack.c.b16 %v442, %v441
      %459 = vmatpush.bf16.msra.mxu0 %v450
      %460 = vmatpush.bf16.msra.mxu0 %v449
      %461 = vmatpush.bf16.msra.mxu0 %v448
      %462 = vmatpush.bf16.msra.mxu0 %v447
      %463 = vmatpush.bf16.msra.mxu0 %v446
      %464 = vmatpush.bf16.msra.mxu0 %v445
      %465 = vmatpush.bf16.msra.mxu0 %v444
      %466 = vmatpush.bf16.msra.mxu0 %v443
      %467 = vmatmul.bf16.gmra.mxu0 %v385
      %v468 = vpop.f32.mrf.mxu0
      %v469 = vadd.f32 0.0, %v468
      %v470 = vpop.f32.mrf.mxu0
      %v471 = vadd.f32 0.0, %v470
      %472 = vmatmul.bf16.gmra.mxu0 %v386
      %v473 = vpop.f32.mrf.mxu0
      %v474 = vadd.f32 0.0, %v473
      %v475 = vpop.f32.mrf.mxu0
      %v476 = vadd.f32 0.0, %v475
      %477 = vmatmul.bf16.gmra.mxu0 %v387
      %v478 = vpop.f32.mrf.mxu0
      %v479 = vadd.f32 0.0, %v478
      %v480 = vpop.f32.mrf.mxu0
      %v481 = vadd.f32 0.0, %v480
      %482 = vmatmul.bf16.gmra.mxu0 %v388
      %v483 = vpop.f32.mrf.mxu0
      %v484 = vadd.f32 0.0, %v483
      %v485 = vpop.f32.mrf.mxu0
      %v486 = vadd.f32 0.0, %v485
      %487 = vmatmul.bf16.gmra.mxu0 %v389
      %v488 = vpop.f32.mrf.mxu0
      %v489 = vadd.f32 0.0, %v488
      %v490 = vpop.f32.mrf.mxu0
      %v491 = vadd.f32 0.0, %v490
      %492 = vmatmul.bf16.gmra.mxu0 %v390
      %v493 = vpop.f32.mrf.mxu0
      %v494 = vadd.f32 0.0, %v493
      %v495 = vpop.f32.mrf.mxu0
      %v496 = vadd.f32 0.0, %v495
      %497 = vmatmul.bf16.gmra.mxu0 %v391
      %v498 = vpop.f32.mrf.mxu0
      %v499 = vadd.f32 0.0, %v498
      %v500 = vpop.f32.mrf.mxu0
      %v501 = vadd.f32 0.0, %v500
      %502 = vmatmul.bf16.gmra.mxu0 %v392
      %v503 = vpop.f32.mrf.mxu0
      %v504 = vadd.f32 0.0, %v503
      %v505 = vpop.f32.mrf.mxu0
      %v506 = vadd.f32 0.0, %v505
      %507 = vmatmul.bf16.gmra.mxu0 %v393
      %v508 = vpop.f32.mrf.mxu0
      %v509 = vadd.f32 0.0, %v508
      %v510 = vpop.f32.mrf.mxu0
      %v511 = vadd.f32 0.0, %v510
      %512 = vmatmul.bf16.gmra.mxu0 %v394
      %v513 = vpop.f32.mrf.mxu0
      %v514 = vadd.f32 0.0, %v513
      %v515 = vpop.f32.mrf.mxu0
      %516 = vdwg.mxu0
      %v517 = vmax.f32 %v469, 0.0
      %v518 = vmax.f32 %v471, 0.0
      %v519 = vmax.f32 %v474, 0.0
      %v520 = vmax.f32 %v476, 0.0
      %v521 = vmax.f32 %v479, 0.0
      %v522 = vmax.f32 %v481, 0.0
      %v523 = vmax.f32 %v484, 0.0
      %v524 = vmax.f32 %v486, 0.0
      %v525 = vmax.f32 %v489, 0.0
      %v526 = vmax.f32 %v491, 0.0
      %v527 = vmax.f32 %v494, 0.0
      %v528 = vmax.f32 %v496, 0.0
      %v529 = vmax.f32 %v499, 0.0
      %v530 = vmax.f32 %v501, 0.0
      %v531 = vmax.f32 %v504, 0.0
      %v532 = vmax.f32 %v506, 0.0
      %v533 = vmax.f32 %v509, 0.0
      %v534 = vmax.f32 %v511, 0.0
      %v535 = vmax.f32 %v514, 0.0
      %v536 = vpack.c.bf16 %v518, %v517
      %v537 = vpack.c.bf16 %v520, %v519
      %v538 = vpack.c.bf16 %v522, %v521
      %v539 = vpack.c.bf16 %v524, %v523
      %v540 = vpack.c.bf16 %v526, %v525
      %v541 = vpack.c.bf16 %v528, %v527
      %v542 = vpack.c.bf16 %v530, %v529
      %v543 = vpack.c.bf16 %v532, %v531
      %v544 = vpack.c.bf16 %v534, %v533
      %v545 = vpack.c.bf16 %v535, %v535
      %v546 = vld [vmem:[%s3] sm:$0xf]
      %v547 = vld [vmem:[%s3 + $0x4] sm:$0xf]
      %v548 = vld [vmem:[%s3 + $0x8] sm:$0xf]
      %v549 = vld [vmem:[%s3 + $0xc] sm:$0xf]
      %v550 = vld [vmem:[%s3 + $0x10] sm:$0xf]
      %v551 = vld [vmem:[%s3 + $0x14] sm:$0xf]
      %v552 = vld [vmem:[%s3 + $0x18] sm:$0xf]
      %v553 = vld [vmem:[%s3 + $0x1c] sm:$0xf]
      %v554 = vld [vmem:[%s3 + $0x20] sm:$0xf]
      %v555 = vld [vmem:[%s3 + $0x24] sm:$0xf]
      %v556 = vld [vmem:[%s3 + $0x28] sm:$0xf]
      %v557 = vld [vmem:[%s3 + $0x2c] sm:$0xf]
      %v558 = vld [vmem:[%s3 + $0x30] sm:$0xf]
      %v559 = vld [vmem:[%s3 + $0x34] sm:$0xf]
      %v560 = vld [vmem:[%s3 + $0x38] sm:$0xf]
      %v561 = vld [vmem:[%s3 + $0x3c] sm:$0xf]
      %v578 = vunpack.c.l.b16 %v546
      %v579 = vunpack.c.l.b16 %v547
      %v580 = vunpack.c.l.b16 %v548
      %v581 = vunpack.c.l.b16 %v549
      %v582 = vunpack.c.l.b16 %v550
      %v583 = vunpack.c.l.b16 %v551
      %v584 = vunpack.c.l.b16 %v552
      %v585 = vunpack.c.l.b16 %v553
      %v586 = vunpack.c.l.b16 %v554
      %v587 = vunpack.c.l.b16 %v555
      %v588 = vunpack.c.l.b16 %v556
      %v589 = vunpack.c.l.b16 %v557
      %v590 = vunpack.c.l.b16 %v558
      %v591 = vunpack.c.l.b16 %v559
      %v592 = vunpack.c.l.b16 %v560
      %v593 = vunpack.c.l.b16 %v561
      %v594 = vpack.c.b16 %v579, %v578
      %v595 = vpack.c.b16 %v581, %v580
      %v596 = vpack.c.b16 %v583, %v582
      %v597 = vpack.c.b16 %v585, %v584
      %v598 = vpack.c.b16 %v587, %v586
      %v599 = vpack.c.b16 %v589, %v588
      %v600 = vpack.c.b16 %v591, %v590
      %v601 = vpack.c.b16 %v593, %v592
      %610 = vmatpush.bf16.msra.mxu0 %v601
      %611 = vmatpush.bf16.msra.mxu0 %v600
      %612 = vmatpush.bf16.msra.mxu0 %v599
      %613 = vmatpush.bf16.msra.mxu0 %v598
      %614 = vmatpush.bf16.msra.mxu0 %v597
      %615 = vmatpush.bf16.msra.mxu0 %v596
      %616 = vmatpush.bf16.msra.mxu0 %v595
      %617 = vmatpush.bf16.msra.mxu0 %v594
      %618 = vmatmul.bf16.gmra.mxu0 %v536
      %v619 = vpop.f32.mrf.mxu0
      %v620 = vadd.f32 0.0, %v619
      %v621 = vpop.f32.mrf.mxu0
      %v622 = vadd.f32 0.0, %v621
      %623 = vmatmul.bf16.gmra.mxu0 %v537
      %v624 = vpop.f32.mrf.mxu0
      %v625 = vadd.f32 0.0, %v624
      %v626 = vpop.f32.mrf.mxu0
      %v627 = vadd.f32 0.0, %v626
      %628 = vmatmul.bf16.gmra.mxu0 %v538
      %v629 = vpop.f32.mrf.mxu0
      %v630 = vadd.f32 0.0, %v629
      %v631 = vpop.f32.mrf.mxu0
      %v632 = vadd.f32 0.0, %v631
      %633 = vmatmul.bf16.gmra.mxu0 %v539
      %v634 = vpop.f32.mrf.mxu0
      %v635 = vadd.f32 0.0, %v634
      %v636 = vpop.f32.mrf.mxu0
      %v637 = vadd.f32 0.0, %v636
      %638 = vmatmul.bf16.gmra.mxu0 %v540
      %v639 = vpop.f32.mrf.mxu0
      %v640 = vadd.f32 0.0, %v639
      %v641 = vpop.f32.mrf.mxu0
      %v642 = vadd.f32 0.0, %v641
      %643 = vmatmul.bf16.gmra.mxu0 %v541
      %v644 = vpop.f32.mrf.mxu0
      %v645 = vadd.f32 0.0, %v644
      %v646 = vpop.f32.mrf.mxu0
      %v647 = vadd.f32 0.0, %v646
      %648 = vmatmul.bf16.gmra.mxu0 %v542
      %v649 = vpop.f32.mrf.mxu0
      %v650 = vadd.f32 0.0, %v649
      %v651 = vpop.f32.mrf.mxu0
      %v652 = vadd.f32 0.0, %v651
      %653 = vmatmul.bf16.gmra.mxu0 %v543
      %v654 = vpop.f32.mrf.mxu0
      %v655 = vadd.f32 0.0, %v654
      %v656 = vpop.f32.mrf.mxu0
      %v657 = vadd.f32 0.0, %v656
      %658 = vmatmul.bf16.gmra.mxu0 %v544
      %v659 = vpop.f32.mrf.mxu0
      %v660 = vadd.f32 0.0, %v659
      %v661 = vpop.f32.mrf.mxu0
      %v662 = vadd.f32 0.0, %v661
      %663 = vmatmul.bf16.gmra.mxu0 %v545
      %v664 = vpop.f32.mrf.mxu0
      %v665 = vadd.f32 0.0, %v664
      %v666 = vpop.f32.mrf.mxu0
      %667 = vdwg.mxu0
      %668 = vst.msk [vmem:[%s199] sm:$0xff] %vm277, %v620
      %669 = vst.msk [vmem:[%s199 + $0x8] sm:$0xff] %vm277, %v622
      %670 = vst.msk [vmem:[%s199 + $0x10] sm:$0xff] %vm277, %v625
      %671 = vst.msk [vmem:[%s199 + $0x18] sm:$0xff] %vm277, %v627
      %672 = vst.msk [vmem:[%s199 + $0x20] sm:$0xff] %vm277, %v630
      %673 = vst.msk [vmem:[%s199 + $0x28] sm:$0xff] %vm277, %v632
      %674 = vst.msk [vmem:[%s199 + $0x30] sm:$0xff] %vm277, %v635
      %675 = vst.msk [vmem:[%s199 + $0x38] sm:$0xff] %vm277, %v637
      %676 = vst.msk [vmem:[%s199 + $0x40] sm:$0xff] %vm277, %v640
      %677 = vst.msk [vmem:[%s199 + $0x48] sm:$0xff] %vm277, %v642
      %678 = vst.msk [vmem:[%s199 + $0x50] sm:$0xff] %vm277, %v645
      %679 = vst.msk [vmem:[%s199 + $0x58] sm:$0xff] %vm277, %v647
      %680 = vst.msk [vmem:[%s199 + $0x60] sm:$0xff] %vm277, %v650
      %681 = vst.msk [vmem:[%s199 + $0x68] sm:$0xff] %vm277, %v652
      %682 = vst.msk [vmem:[%s199 + $0x70] sm:$0xff] %vm277, %v655
      %683 = vst.msk [vmem:[%s199 + $0x78] sm:$0xff] %vm277, %v657
      %684 = vst.msk [vmem:[%s199 + $0x80] sm:$0xff] %vm277, %v660
      %685 = vst.msk [vmem:[%s199 + $0x88] sm:$0xff] %vm277, %v662
      %686 = vst.msk [vmem:[%s199 + $0x90] sm:$0xff] %vm277, %v665
      %s687 = smul.u32 19, %s15
      %p688 = scmp.lt.s32.totalorder %s687, 37
      %s689 = scalar_select %p688, %s687, 37
      %s690 = smul.addr %s689, 8
      %s691 = scalar_lea.vmem %s4, %s690
      // Predicated region
      $region37: #{tpu_custom_call.1} parent=35 // pred_check
        %p692 = pneg %p122
      $region38: #{tpu_custom_call.1} parent=35 // pred_check_branch
        %694 = sbr.rel (%p692) target = $region40
      $region39: #{tpu_custom_call.1} parent=35 // pred_region
        %s695 = smul.u32 19, %s15
      $region40: #{tpu_custom_call.1} parent=35 // pred_fallthru
        _
    $region36: #{tpu_custom_call.1} parent=5 // pred_fallthru
      _
    %p696 = scmp.le.s32.totalorder 2, %s10
    // Predicated region
    $region41: #{tpu_custom_call.1} parent=5 // pred_check
      %p697 = pneg %p696
    $region42: #{tpu_custom_call.1} parent=5 // pred_check_branch
      %699 = sbr.rel (%p697) target = $region44
    $region43: #{tpu_custom_call.1} parent=5 // pred_region
      %s700 = ssub.s32 %s10, 2
      // Predicated region
      $region45: #{tpu_custom_call.1} parent=43 // pred_check
        %p701 = pneg %p128
      $region46: #{tpu_custom_call.1} parent=43 // pred_check_branch
        %703 = sbr.rel (%p701) target = $region48
      $region47: #{tpu_custom_call.1} parent=43 // pred_region
        %s704 = smul.u32 19, %s16
        %p705 = scmp.lt.s32.totalorder %s704, 37
        %s706 = scalar_select %p705, %s704, 37
        %s707 = smul.addr %s706, 8
        %s708 = scalar_lea.vmem %s4, %s707
      $region48: #{tpu_custom_call.1} parent=43 // pred_fallthru
        _
    $region44: #{tpu_custom_call.1} parent=5 // pred_fallthru
      _
  $region6: #{tpu_custom_call.1} parent=0 // loop_footer
    %s14 = sadd.s32 1, %s10
  $region7: #{tpu_custom_call.1} parent=0 // loop_footer_branch
    %9 = sbr.rel target = $region3
  $region8: #{tpu_custom_call.1} parent=0 // loop_exit
    _

</llo_original>
